<compile_context>
chip_gen: v7x
topology: tpu7x:2x2x1
jax: 0.10.0
libtpu: 0.0.40
codegen_flags: <defaults>
</compile_context>

<pallas_src>
import jax
import jax.numpy as jnp
from jax import lax
from jax.experimental import pallas as pl
from jax.experimental.pallas import tpu as pltpu

_LANE = 128


def _round_down(x, m):
    return (x // m) * m


def make_kd_loss(H, W, T=1.0, kl_loss_factor=1.0, *,
                 dtype=jnp.float32,
                 block_bytes=2 * 1024 * 1024,
                 num_parallel=1,
                 core_parallel=False):
    """Returns kd_loss(s_out, t_out) -> scalar float32 (KDLoss forward)."""
    n = H * W                                   # 'batchmean' denominator
    scale = float(T) * float(T) * float(kl_loss_factor)
    itemsize = jnp.dtype(dtype).itemsize
    sub = {4: 8, 2: 16, 1: 32}[itemsize]        # sublane multiple per dtype

    # ---- view geometry: never copy/pad the inputs in the wrapper ----------
    if n % _LANE == 0:
        R, C = n // _LANE, _LANE                # free lane-dense reshape
        lane_dense = True
    else:
        R, C = H, W                             # stream the original layout
        lane_dense = False

    if R <= sub:
        tile_r = R                              # full-extent block: always legal
    else:
        rows_fit = max(sub, _round_down(block_bytes // (C * itemsize), sub))
        tile_r = min(rows_fit, _round_down(R, sub))

    nblocks = pl.cdiv(R, tile_r)
    # Leading "chunk" axis (only useful with core_parallel on multi-TC chips).
    P = num_parallel if (num_parallel > 1 and nblocks % num_parallel == 0) else 1
    k_steps = nblocks // P

    # U independent (8, C) accumulator groups -> breaks the serial add chain.
    if tile_r % 8 == 0:
        U = next(u for u in (8, 4, 2, 1) if (tile_r // 8) % u == 0)
    else:
        U = 1

    def kd_loss_kernel(s_ref, t_ref, o_ref, acc_ref):
        p = pl.program_id(0)
        k = pl.program_id(1)

        @pl.when(k == 0)
        def _():
            acc_ref[...] = jnp.zeros_like(acc_ref)

        s = s_ref[...].astype(jnp.float32)
        t = t_ref[...].astype(jnp.float32)

        # reshape(H*W, 1) -> one class per row, so
        #   log_softmax(x/T) == x' - x'   (0, or NaN for NaN/Inf input)
        #   softmax(t/T)     == 1         (or NaN)
        # q*(log q - log p) == (t' - t') - (s' - s'); the /T cancels inside the
        # subtraction.  Bit-identical for finite inputs; differs only when
        # |x|/T would overflow f32 to Inf (documented, accepted).
        kl = (t - t) - (s - s)                          # (tile_r, C); 0 or NaN

        # Mask rows past R: the ragged last block reads unspecified pad data.
        row0 = (p * k_steps + k) * tile_r
        rid = row0 + lax.broadcasted_iota(jnp.int32, (tile_r, 1), 0)
        kl = jnp.where(rid < R, kl, 0.0)

        # Fold into U independent (8, C) partials: pure VPU vreg adds, no
        # per-step cross-lane reduce, no single-vreg dependency chain.
        if tile_r % 8 == 0:
            acc_ref[...] += kl.reshape(tile_r // (8 * U), U, 8, C).sum(axis=0)
        elif tile_r <= 8:
            acc_ref[0, 0:tile_r, :] += kl
        else:                                           # U == 1 here
            r8 = _round_down(tile_r, 8)
            acc_ref[...] += kl[0:r8, :].reshape(r8 // 8, 1, 8, C).sum(axis=0)
            acc_ref[0, 0:tile_r - r8, :] += kl[r8:tile_r, :]

        @pl.when(k == pl.num_programs(1) - 1)
        def _():
            o_ref[...] = jnp.sum(acc_ref[...], axis=0)  # collapse to (8, C)

    row_block = lambda p, k: (p * k_steps + k, 0)
    sems = ((pltpu.CORE_PARALLEL, pltpu.ARBITRARY) if core_parallel
            else ("parallel", "arbitrary"))

    pallas_fn = pl.pallas_call(
        kd_loss_kernel,
        out_shape=jax.ShapeDtypeStruct((P * 8, C), jnp.float32),
        grid_spec=pltpu.PrefetchScalarGridSpec(
            num_scalar_prefetch=0,
            grid=(P, k_steps),
            in_specs=[pl.BlockSpec((tile_r, C), row_block),
                      pl.BlockSpec((tile_r, C), row_block)],
            out_specs=pl.BlockSpec((8, C), lambda p, k: (p, 0)),
            scratch_shapes=[pltpu.VMEM((U, 8, C), jnp.float32)],
        ),
        compiler_params=pltpu.CompilerParams(dimension_semantics=sems),
        cost_estimate=pl.CostEstimate(
            flops=4 * n,
            transcendentals=0,
            bytes_accessed=2 * n * itemsize + P * 8 * C * 4,
        ),
    )

    def kd_loss(s_out, t_out):
        s = s_out.astype(dtype)
        t = t_out.astype(dtype)
        if lane_dense:
            s = s.reshape(R, C)                 # free view of contiguous data
            t = t.reshape(R, C)
        partials = pallas_fn(s, t)              # (P*8, C) f32 partial sums
        # batchmean (divide by H*W), then * T^2 * kl_loss_factor
        return jnp.sum(partials) * jnp.float32(scale / n)

    return kd_loss


def kd_loss_reference(s_out, t_out, T=1.0, kl_loss_factor=1.0):
    """Pure-JAX reference mirroring the PyTorch forward."""
    s = s_out.reshape(-1, 1).astype(jnp.float32) / T
    t = t_out.reshape(-1, 1).astype(jnp.float32) / T
    log_p = jax.nn.log_softmax(s, axis=1)
    q = jax.nn.softmax(t, axis=1)
    kl = jnp.sum(q * (jnp.log(q) - log_p)) / s.shape[0]
    return kl * T * T * kl_loss_factor


if __name__ == "__main__":
    key = jax.random.PRNGKey(0)
    k1, k2, k3, k4, k5, k6 = jax.random.split(key, 6)

    # Case 1: n % 128 == 0 (free lane-dense reshape), non-trivial T / factor.
    H1, W1 = 16, 16
    s1 = jax.random.normal(k1, (H1, W1), dtype=jnp.float32)
    t1 = jax.random.normal(k2, (H1, W1), dtype=jnp.float32)
    kd1 = make_kd_loss(H1, W1, T=2.0, kl_loss_factor=0.5)
    out1 = jax.block_until_ready(kd1(s1, t1))
    ref1 = kd_loss_reference(s1, t1, T=2.0, kl_loss_factor=0.5)
    assert jnp.allclose(out1, ref1, atol=1e-6), (out1, ref1)

    # Case 2: n % 128 != 0 -> original-layout path + ragged-row masking, no pad.
    H2, W2 = 25, 30
    s2 = jax.random.normal(k3, (H2, W2), dtype=jnp.float32)
    t2 = jax.random.normal(k4, (H2, W2), dtype=jnp.float32)
    kd2 = make_kd_loss(H2, W2)
    out2 = jax.block_until_ready(kd2(s2, t2))
    ref2 = kd_loss_reference(s2, t2)
    assert jnp.allclose(out2, ref2, atol=1e-6), (out2, ref2)

    # Case 3: bf16 inputs (sublane multiple 16), multi-step reduction + U>1.
    H3, W3 = 48, 64                      # n = 3072 -> R = 24, C = 128
    s3 = jax.random.normal(k5, (H3, W3), dtype=jnp.float32).astype(jnp.bfloat16)
    t3 = jax.random.normal(k6, (H3, W3), dtype=jnp.float32).astype(jnp.bfloat16)
    kd3 = make_kd_loss(H3, W3, dtype=jnp.bfloat16, block_bytes=16 * 128 * 2)
    out3 = jax.block_until_ready(kd3(s3, t3))
    ref3 = kd_loss_reference(s3, t3)
    assert jnp.allclose(out3, ref3, atol=1e-6), (out3, ref3)

    print("KERNEL_OK")
</pallas_src>

<mosaic_0001>
module attributes {stable_mosaic.version = 11 : i64} {
  func.func @kd_loss_kernel(%arg0: i32, %arg1: i32, %arg2: memref<2x128xf32, #tpu.memory_space<vmem>>, %arg3: memref<2x128xf32, #tpu.memory_space<vmem>>, %arg4: memref<8x128xf32, #tpu.memory_space<vmem>>, %arg5: memref<1x8x128xf32, #tpu.memory_space<vmem>>) attributes {dimension_semantics = [#tpu.dimension_semantics<parallel>, #tpu.dimension_semantics<arbitrary>], iteration_bounds = array<i64: 1, 1>, scalar_prefetch = 0 : i64, scratch_operands = 1 : i64, tpu.core_type = #tpu.core_type<tc>, window_params = [{transform_indices = @transform_0, window_bounds = array<i64: 2, 128>}, {transform_indices = @transform_1, window_bounds = array<i64: 2, 128>}, {transform_indices = @transform_2, window_bounds = array<i64: 8, 128>}]} {
    %c0_i32 = arith.constant 0 : i32
    %0 = arith.cmpi eq, %arg1, %c0_i32 : i32
    %1 = arith.extui %0 : i1 to i32
    %c0_i32_0 = arith.constant 0 : i32
    %2 = arith.cmpi ne, %1, %c0_i32_0 : i32
    scf.if %2 {
      %cst_13 = arith.constant 0.000000e+00 : f32
      %29 = vector.broadcast %cst_13 : f32 to vector<1x8x128xf32>
      %c0_14 = arith.constant 0 : index
      %c0_15 = arith.constant 0 : index
      %c0_16 = arith.constant 0 : index
      %30 = vector.load %arg5[%c0_14, %c0_15, %c0_16] : memref<1x8x128xf32, #tpu.memory_space<vmem>>, vector<1x8x128xf32>
      tpu.vector_store %arg5[%c0_14, %c0_15, %c0_16], %29 {strides = array<i32>} : memref<1x8x128xf32, #tpu.memory_space<vmem>>, vector<1x8x128xf32>,
    } else {
    }
    %c0 = arith.constant 0 : index
    %c0_1 = arith.constant 0 : index
    %3 = vector.load %arg2[%c0, %c0_1] : memref<2x128xf32, #tpu.memory_space<vmem>>, vector<2x128xf32>
    %c0_2 = arith.constant 0 : index
    %c0_3 = arith.constant 0 : index
    %4 = vector.load %arg3[%c0_2, %c0_3] : memref<2x128xf32, #tpu.memory_space<vmem>>, vector<2x128xf32>
    %5 = arith.subf %4, %4 : vector<2x128xf32>
    %6 = arith.subf %3, %3 : vector<2x128xf32>
    %7 = arith.subf %5, %6 : vector<2x128xf32>
    %c1_i32 = arith.constant 1 : i32
    %8 = arith.muli %arg0, %c1_i32 : i32
    %9 = arith.addi %8, %arg1 : i32
    %c2_i32 = arith.constant 2 : i32
    %10 = arith.muli %9, %c2_i32 : i32
    %11 = tpu.iota {dimensions = array<i32: 0>} : vector<2x1xi32>
    %12 = vector.broadcast %10 : i32 to vector<2x1xi32>
    %13 = arith.addi %12, %11 : vector<2x1xi32>
    %c2_i32_4 = arith.constant 2 : i32
    %14 = vector.broadcast %c2_i32_4 : i32 to vector<2x1xi32>
    %15 = arith.cmpi slt, %13, %14 : vector<2x1xi32>
    %cst = arith.constant 0.000000e+00 : f32
    %16 = vector.shape_cast %15 : vector<2x1xi1> to vector<2x1xi1>
    %17 = vector.broadcast %16 : vector<2x1xi1> to vector<2x128xi1>
    %18 = vector.broadcast %cst : f32 to vector<2x128xf32>
    %19 = arith.select %17, %7, %18 : vector<2x128xi1>, vector<2x128xf32>
    %c0_5 = arith.constant 0 : index
    %c0_6 = arith.constant 0 : index
    %c0_7 = arith.constant 0 : index
    %20 = vector.load %arg5[%c0_5, %c0_6, %c0_7] : memref<1x8x128xf32, #tpu.memory_space<vmem>>, vector<1x2x128xf32>
    %21 = vector.shape_cast %20 : vector<1x2x128xf32> to vector<2x128xf32>
    %22 = arith.addf %21, %19 : vector<2x128xf32>
    %c0_8 = arith.constant 0 : index
    %c0_9 = arith.constant 0 : index
    %c0_10 = arith.constant 0 : index
    %23 = vector.load %arg5[%c0_8, %c0_9, %c0_10] : memref<1x8x128xf32, #tpu.memory_space<vmem>>, vector<1x2x128xf32>
    %24 = vector.shape_cast %23 : vector<1x2x128xf32> to vector<2x128xf32>
    %25 = vector.shape_cast %22 : vector<2x128xf32> to vector<1x2x128xf32>
    tpu.vector_store %arg5[%c0_8, %c0_9, %c0_10], %25 {strides = array<i32>} : memref<1x8x128xf32, #tpu.memory_space<vmem>>, vector<1x2x128xf32>,
    %c0_i32_11 = arith.constant 0 : i32
    %26 = arith.cmpi eq, %arg1, %c0_i32_11 : i32
    %27 = arith.extui %26 : i1 to i32
    %c0_i32_12 = arith.constant 0 : i32
    %28 = arith.cmpi ne, %27, %c0_i32_12 : i32
    scf.if %28 {
      %c0_13 = arith.constant 0 : index
      %c0_14 = arith.constant 0 : index
      %c0_15 = arith.constant 0 : index
      %29 = vector.load %arg5[%c0_13, %c0_14, %c0_15] : memref<1x8x128xf32, #tpu.memory_space<vmem>>, vector<1x8x128xf32>
      %cst_16 = arith.constant dense<0.000000e+00> : vector<8x128xf32>
      %30 = vector.multi_reduction <add>, %29, %cst_16 [0] : vector<1x8x128xf32> to vector<8x128xf32>
      %c0_17 = arith.constant 0 : index
      %c0_18 = arith.constant 0 : index
      %31 = vector.load %arg4[%c0_17, %c0_18] : memref<8x128xf32, #tpu.memory_space<vmem>>, vector<8x128xf32>
      tpu.vector_store %arg4[%c0_17, %c0_18], %30 {strides = array<i32>} : memref<8x128xf32, #tpu.memory_space<vmem>>, vector<8x128xf32>,
    } else {
    }
    return
  }
  func.func @transform_0(%arg0: i32, %arg1: i32) -> (i32, i32) {
    %c1_i32 = arith.constant 1 : i32
    %0 = arith.muli %arg0, %c1_i32 : i32
    %1 = arith.addi %0, %arg1 : i32
    %c0_i32 = arith.constant 0 : i32
    %c0_i32_0 = arith.constant 0 : i32
    return %1, %c0_i32 : i32, i32
  }
  func.func @transform_1(%arg0: i32, %arg1: i32) -> (i32, i32) {
    %c1_i32 = arith.constant 1 : i32
    %0 = arith.muli %arg0, %c1_i32 : i32
    %1 = arith.addi %0, %arg1 : i32
    %c0_i32 = arith.constant 0 : i32
    %c0_i32_0 = arith.constant 0 : i32
    return %1, %c0_i32 : i32, i32
  }
  func.func @transform_2(%arg0: i32, %arg1: i32) -> (i32, i32) {
    %c0_i32 = arith.constant 0 : i32
    %c0_i32_0 = arith.constant 0 : i32
    return %arg0, %c0_i32 : i32, i32
  }
}

</mosaic_0001>

<llo_original>
// kernel: tpu_custom_call.1
$region0: #{tpu_custom_call.1}
  #allocation0 [shape = 'u32[]', space=smem, size = 0x4, offset = 0x4, fixed_abs, tag = 'smem constant byte address 0x4 - core index']
  #allocation1 [shape = 'u32[144,128]{1,0:T(1,128)}', space=vmem, size = 0x12000, scoped, tag = 'internal scratch']
  #allocation2 [shape = 'f32[1,8,128]{2,1,0:T(8,128)}', space=vmem, size = 0x1000, scoped, tag = 'scratch operand']
  %s0 = inlined_call_operand.hbm [shape: f32[2,128], index: 0, kind: input, shape index: {}]
  %s1 = inlined_call_operand.vmem [shape: f32[2,128], index: 1, kind: input, shape index: {}]
  %s2 = inlined_call_operand.hbm [shape: f32[8,128], index: 2, kind: output, shape index: {}]
  %s3 = sld [smem:[#allocation0]]
  $region30: #{tpu_custom_call.1} parent=0
    _
  %s5 = ssub.s32 1, %s3
  %s6 = scalar_select 0, %s5, %s3
  $region1: #{tpu_custom_call.1} parent=0
    #allocation3 [shape = 'u8[1024]{0}', space=vmem, size = 0x400, scoped, tag = 'input window, operand 0, single buffered']
    #allocation4 [shape = 's32[1]{0}', space=sflag, size = 0x4, scoped, tag = 'scoped memory for tpu_custom_call.1']
    #allocation5 [shape = 's32[1]{0}', space=sflag, size = 0x4, scoped, tag = 'scoped memory for tpu_custom_call.1']
    #allocation6 [shape = 'u8[4096]{0}', space=vmem, size = 0x1000, scoped, tag = 'output window, operand 0, single buffered']
    %7 = vsyncpa [#allocation4], 0
    %8 = vsyncpa [#allocation5], 0
    // Predicated region
    $region2: #{tpu_custom_call.1} parent=1 // pred_check
      _
    $region3: #{tpu_custom_call.1} parent=1 // pred_check_branch
      %10 = sbr.rel (0) target = $region5
    $region4: #{tpu_custom_call.1} parent=1 // pred_region
      %s11 = sadd.s32 0, 0
      %s13 = ssub.s32 32, 32
      %14 = vsyncadd [#allocation4], %s13
      %s15 = smul.addr %s11, 32
      %s16 = scalar_lea.hbm %s0, %s15
      %s18 = sshll.u32 [#allocation3], 4
      %s19 = int_to_ptr.vmem [resolvable:$true] %s18
      %21 = dma.hbm_to_vmem [thread:$0]  %s16, 32, %s19, [#allocation4]
    $region5: #{tpu_custom_call.1} parent=1 // pred_fallthru
      _
    // Predicated region
    $region6: #{tpu_custom_call.1} parent=1 // pred_check
      _
    $region7: #{tpu_custom_call.1} parent=1 // pred_check_branch
      %23 = sbr.rel (0) target = $region9
    $region8: #{tpu_custom_call.1} parent=1 // pred_region
      %s24 = sadd.s32 0, 0
      %p25 = scmp.lt.s32.totalorder %s24, 0
      %s26 = scalar_select %p25, %s24, 0
      %s27 = smul.addr %s26, 2
      %s28 = scalar_lea.vmem %s1, %s27
      %s29 = sadd.s32 0, 0
    $region9: #{tpu_custom_call.1} parent=1 // pred_fallthru
      _
    // Predicated region
    $region10: #{tpu_custom_call.1} parent=1 // pred_check
      _
    $region11: #{tpu_custom_call.1} parent=1 // pred_check_branch
      %31 = sbr.rel (0) target = $region13
    $region12: #{tpu_custom_call.1} parent=1 // pred_region
      %32 = dma.done [#allocation4], 32
    $region13: #{tpu_custom_call.1} parent=1 // pred_fallthru
      _
    %s33 = sadd.s32 0, 0
    %p34 = scmp.lt.s32.totalorder %s33, 0
    %s35 = scalar_select %p34, %s33, 0
    %s36 = smul.addr %s35, 2
    %s37 = scalar_lea.vmem %s1, %s36
    %s38 = sadd.s32 0, 0
    %s39 = sadd.s32 0, 0
    %p40 = scmp.lt.s32.totalorder %s39, 0
    %s41 = scalar_select %p40, %s39, 0
    %s42 = smul.addr %s41, 2
    %s43 = scalar_lea.vmem %s1, %s42
    %s44 = sadd.s32 0, 0
    %p45 = scmp.eq.s32.totalorder 0, 0
    // Predicated region
    $region14: #{tpu_custom_call.1} parent=1 // pred_check
      %p46 = pneg %p45
    $region15: #{tpu_custom_call.1} parent=1 // pred_check_branch
      %48 = sbr.rel (%p46) target = $region17
    $region16: #{tpu_custom_call.1} parent=1 // pred_region
      %49 = vst [vmem:[#allocation2] sm:$0xff] 0.0
    $region17: #{tpu_custom_call.1} parent=1 // pred_fallthru
      _
    %v50 = vld [vmem:[#allocation3] sm:$0x3]
    %v51 = vld [vmem:[%s43] sm:$0x3]
    %v52 = vsub.f32 %v51, %v51
    %v53 = vsub.f32 %v50, %v50
    %v54 = vsub.f32 %v52, %v53
    %s55 = sadd.s32 0, 0
    %s56 = smul.u32 %s55, 2
    %v57 = vlaneseq
    %v58 = vshrl.u32 %v57, 7
    %v59 = vstv %s56
    %v60 = vadd.s32 %v59, %v58
    %vm61 = vcmp.lt.s32.totalorder %v60, 2
    %v62 = vsel %vm61, 1, 0
    %vm63 = vcmp.eq.s32.totalorder %v62, 1
    %v64 = vsel %vm63, %v54, 0.0
    %v65 = vld [vmem:[#allocation2] sm:$0x3]
    %v66 = vadd.f32 %v65, %v64
    %67 = vst [vmem:[#allocation2] sm:$0x3] %v66
    // Predicated region
    $region18: #{tpu_custom_call.1} parent=1 // pred_check
      %p68 = pneg %p45
    $region19: #{tpu_custom_call.1} parent=1 // pred_check_branch
      %70 = sbr.rel (%p68) target = $region21
    $region20: #{tpu_custom_call.1} parent=1 // pred_region
      %v71 = vld [vmem:[#allocation2] sm:$0xff]
      %v72 = vadd.f32 %v71, 0.0
      %73 = vst [vmem:[#allocation6] sm:$0xff] %v72
    $region21: #{tpu_custom_call.1} parent=1 // pred_fallthru
      _
    // Predicated region
    $region22: #{tpu_custom_call.1} parent=1 // pred_check
      _
    $region23: #{tpu_custom_call.1} parent=1 // pred_check_branch
      %75 = sbr.rel (0) target = $region25
    $region24: #{tpu_custom_call.1} parent=1 // pred_region
      %s77 = ssub.s32 128, 128
      %78 = vsyncadd [#allocation5], %s77
      %s80 = sshll.u32 [#allocation6], 4
      %s81 = int_to_ptr.vmem [resolvable:$true] %s80
      %83 = dma.vmem_to_hbm [thread:$0]  %s81, 128, %s2, [#allocation5]
    $region25: #{tpu_custom_call.1} parent=1 // pred_fallthru
      _
    // Predicated region
    $region26: #{tpu_custom_call.1} parent=1 // pred_check
      _
    $region27: #{tpu_custom_call.1} parent=1 // pred_check_branch
      %85 = sbr.rel (0) target = $region29
    $region28: #{tpu_custom_call.1} parent=1 // pred_region
      %86 = dma.done [#allocation5], 128
    $region29: #{tpu_custom_call.1} parent=1 // pred_fallthru
      _
    %87 = vsyncpa [#allocation4], 1
    %88 = vsyncpa [#allocation5], 1

</llo_original>
